<compile_context>
chip_gen: v6e
topology: v6e:2x2x1
jax: 0.10.0
libtpu: 0.0.40
codegen_flags: <defaults>
</compile_context>

<pallas_src>
import functools

import jax
import jax.numpy as jnp
from jax import lax
from jax.experimental import pallas as pl
from jax.experimental.pallas import tpu as pltpu


# ---------------------------------------------------------------------------
# Kernel body
# ---------------------------------------------------------------------------
def _disp_reg_kernel(x_ref, o_ref, *scratch, max_disp: int, unroll: int):
    """x_ref: (D, TH, W) VMEM block; o_ref: (TH, W) VMEM block.

    Optional scratch[0]: (TH, W) f32 VMEM accumulator used for large tiles to
    bound vreg pressure; otherwise a loop-carried register accumulator is used.
    """
    D = x_ref.shape[0]

    if scratch:
        acc_ref = scratch[0]
        acc_ref[...] = jnp.zeros_like(acc_ref)

        def body(d, carry):
            w = (d - max_disp).astype(jnp.float32)
            acc_ref[...] += x_ref[d].astype(jnp.float32) * w
            return carry

        lax.fori_loop(0, D, body, 0, unroll=unroll)
        o_ref[...] = acc_ref[...].astype(o_ref.dtype)
    else:
        def body(d, acc):
            w = (d - max_disp).astype(jnp.float32)
            return acc + x_ref[d].astype(jnp.float32) * w

        acc = lax.fori_loop(
            0, D, body, jnp.zeros(o_ref.shape, jnp.float32), unroll=unroll
        )
        o_ref[...] = acc.astype(o_ref.dtype)


# ---------------------------------------------------------------------------
# Generation-aware VMEM budgeting & tiling
# ---------------------------------------------------------------------------
def _vmem_limits():
    """(vmem_limit_bytes, tile_budget_bytes) derived from the same HW number."""
    try:
        physical = int(pltpu.get_tpu_info().vmem_capacity_bytes)
    except Exception:
        physical = 64 * 1024 * 1024  # conservative (v7x-sized) fallback
    # Scoped-VMEM cap with headroom below physical: ~96 MiB on v5e/v6e (128 MiB),
    # ~48 MiB on v7x (64 MiB).
    vmem_limit = min(physical * 3 // 4, 96 * 1024 * 1024)
    # Tiling budget from the same value, ~20% headroom for compiler-internal scratch.
    tile_budget = vmem_limit * 4 // 5
    return vmem_limit, tile_budget


def _sublane_align(itemsize: int) -> int:
    # f32: 8 rows per sublane tile; bf16 packs 2 rows; int8/fp8 pack 4.
    return {4: 8, 2: 16, 1: 32}.get(itemsize, 8)


def _choose_tile_h(D: int, H_pad: int, W: int, itemsize: int, *,
                   n_batch: int, tile_budget: int, align: int,
                   min_grid_steps: int = 8) -> int:
    """Largest TH (multiple of `align`, dividing H_pad) whose double-buffered
    blocks fit the budget while keeping >= min_grid_steps grid steps (v7x 2-TC)."""
    # Per row of H: double-buffered x block + double-buffered out block + f32 acc.
    bytes_per_row = 2 * D * W * itemsize + 2 * W * itemsize + W * 4
    th = tile_budget // max(bytes_per_row, 1)
    # Keep enough parallel grid steps so both v7x TensorCores stay busy.
    steps_per_image = max(1, -(-min_grid_steps // max(n_batch, 1)))  # ceil div
    th = min(th, max(1, H_pad // steps_per_image))
    th = min(th, H_pad)
    th = max(align, (th // align) * align)
    while H_pad % th:
        th -= align
    return max(th, align)


# ---------------------------------------------------------------------------
# Wrapper
# ---------------------------------------------------------------------------
def disparity_regression(x: jax.Array, max_disp: int) -> jax.Array:
    """x: (N, D, H, W) with D == 2*max_disp. Returns (N, 1, H, W) of x.dtype.

    For best throughput feed x in bf16 (kernel upcasts to f32 internally)."""
    N, D, H, W = x.shape
    assert D == 2 * max_disp, "channel dim must equal 2*max_disp"

    itemsize = jnp.dtype(x.dtype).itemsize
    align = _sublane_align(itemsize)
    vmem_limit, tile_budget = _vmem_limits()

    # Pad H so every tile is a full, sublane-aligned block. Zero rows contribute
    # nothing to the weighted sum; they are sliced off the output below.
    H_pad = -(-H // align) * align
    x_p = x if H_pad == H else jnp.pad(
        x, ((0, 0), (0, 0), (0, H_pad - H), (0, 0)))

    TH = _choose_tile_h(D, H_pad, W, itemsize, n_batch=N,
                        tile_budget=tile_budget, align=align)
    grid = (N, H_pad // TH)

    # Large tiles accumulate into a VMEM f32 scratch (bounds vreg pressure);
    # small tiles keep a loop-carried register accumulator.
    use_scratch = TH * W * 4 > 64 * 1024
    scratch_shapes = [pltpu.VMEM((TH, W), jnp.float32)] if use_scratch else []

    kernel = functools.partial(
        _disp_reg_kernel, max_disp=max_disp, unroll=min(D, 8))

    out = pl.pallas_call(
        kernel,
        out_shape=jax.ShapeDtypeStruct((N, 1, H_pad, W), x.dtype),
        grid=grid,
        in_specs=[
            # One (D, TH, W) slab per grid step; batch dim squeezed away.
            pl.BlockSpec((pl.Squeezed(), D, TH, W), lambda n, h: (n, 0, h, 0)),
        ],
        out_specs=pl.BlockSpec(
            (pl.Squeezed(), pl.Squeezed(), TH, W), lambda n, h: (n, 0, h, 0)
        ),
        scratch_shapes=scratch_shapes,
        compiler_params=pltpu.CompilerParams(
            dimension_semantics=("parallel", "parallel"),
            vmem_limit_bytes=vmem_limit,
        ),
        cost_estimate=pl.CostEstimate(
            flops=2 * N * D * H_pad * W,
            transcendentals=0,
            bytes_accessed=N * D * H_pad * W * itemsize
            + N * H_pad * W * itemsize,
        ),
    )(x_p)

    if H_pad != H:
        out = out[:, :, :H, :]
    return out


# ---------------------------------------------------------------------------
# Reference & test
# ---------------------------------------------------------------------------
def _reference(x: jax.Array, max_disp: int) -> jax.Array:
    disp = jnp.arange(-max_disp, max_disp, dtype=jnp.float32).reshape(1, -1, 1, 1)
    return jnp.sum(x.astype(jnp.float32) * disp, axis=1, keepdims=True).astype(x.dtype)


if __name__ == "__main__":
    key = jax.random.PRNGKey(0)
    N, max_disp, H, W = 2, 4, 16, 16          # D = 8
    D = 2 * max_disp
    # x is typically a softmax over the disparity axis; mimic that here.
    logits = jax.random.normal(key, (N, D, H, W), dtype=jnp.float32)
    x = jax.nn.softmax(logits, axis=1)

    # f32 path
    out = disparity_regression(x, max_disp)
    out = jax.block_until_ready(out)
    ref = _reference(x, max_disp)
    assert out.shape == (N, 1, H, W), out.shape
    assert jnp.allclose(out, ref, atol=1e-5, rtol=1e-5), "f32 mismatch vs reference"

    # bf16 path (recommended input dtype: halves HBM read bytes on this
    # read-bound kernel; kernel upcasts to f32 internally).
    x_bf = x.astype(jnp.bfloat16)
    out_bf = jax.block_until_ready(disparity_regression(x_bf, max_disp))
    ref_bf = _reference(x_bf, max_disp)
    assert out_bf.shape == (N, 1, H, W), out_bf.shape
    assert jnp.allclose(out_bf.astype(jnp.float32), ref_bf.astype(jnp.float32),
                        atol=5e-2, rtol=5e-2), "bf16 mismatch vs reference"

    print("KERNEL_OK")
</pallas_src>

<mosaic_0001>
module attributes {stable_mosaic.version = 11 : i64} {
  func.func @_disp_reg_kernel(%arg0: i32, %arg1: i32, %arg2: memref<1x8x8x16xf32, #tpu.memory_space<vmem>>, %arg3: memref<1x1x8x16xf32, #tpu.memory_space<vmem>>) attributes {dimension_semantics = [#tpu.dimension_semantics<parallel>, #tpu.dimension_semantics<parallel>], iteration_bounds = array<i64: 2, 2>, scalar_prefetch = 0 : i64, scratch_operands = 0 : i64, tpu.core_type = #tpu.core_type<tc>, window_params = [{transform_indices = @transform_0, window_bounds = array<i64: 1, 8, 8, 16>}, {transform_indices = @transform_1, window_bounds = array<i64: 1, 1, 8, 16>}]} {
    %cst = arith.constant 0.000000e+00 : f32
    %0 = vector.broadcast %cst : f32 to vector<8x16xf32>
    %c0_i32 = arith.constant 0 : i32
    %c4_i32 = arith.constant 4 : i32
    %1 = arith.subi %c0_i32, %c4_i32 : i32
    %2 = arith.sitofp %1 : i32 to f32
    %c0 = arith.constant 0 : index
    %3 = arith.index_cast %c0_i32 : i32 to index
    %c0_0 = arith.constant 0 : index
    %c0_1 = arith.constant 0 : index
    %4 = vector.load %arg2[%c0, %3, %c0_0, %c0_1] : memref<1x8x8x16xf32, #tpu.memory_space<vmem>>, vector<1x1x8x16xf32>
    %5 = vector.shape_cast %4 : vector<1x1x8x16xf32> to vector<8x16xf32>
    %6 = vector.broadcast %2 : f32 to vector<8x16xf32>
    %7 = arith.mulf %5, %6 : vector<8x16xf32>
    %8 = arith.addf %0, %7 : vector<8x16xf32>
    %c1_i32 = arith.constant 1 : i32
    %c4_i32_2 = arith.constant 4 : i32
    %9 = arith.subi %c1_i32, %c4_i32_2 : i32
    %10 = arith.sitofp %9 : i32 to f32
    %c0_3 = arith.constant 0 : index
    %11 = arith.index_cast %c1_i32 : i32 to index
    %c0_4 = arith.constant 0 : index
    %c0_5 = arith.constant 0 : index
    %12 = vector.load %arg2[%c0_3, %11, %c0_4, %c0_5] : memref<1x8x8x16xf32, #tpu.memory_space<vmem>>, vector<1x1x8x16xf32>
    %13 = vector.shape_cast %12 : vector<1x1x8x16xf32> to vector<8x16xf32>
    %14 = vector.broadcast %10 : f32 to vector<8x16xf32>
    %15 = arith.mulf %13, %14 : vector<8x16xf32>
    %16 = arith.addf %8, %15 : vector<8x16xf32>
    %c2_i32 = arith.constant 2 : i32
    %c4_i32_6 = arith.constant 4 : i32
    %17 = arith.subi %c2_i32, %c4_i32_6 : i32
    %18 = arith.sitofp %17 : i32 to f32
    %c0_7 = arith.constant 0 : index
    %19 = arith.index_cast %c2_i32 : i32 to index
    %c0_8 = arith.constant 0 : index
    %c0_9 = arith.constant 0 : index
    %20 = vector.load %arg2[%c0_7, %19, %c0_8, %c0_9] : memref<1x8x8x16xf32, #tpu.memory_space<vmem>>, vector<1x1x8x16xf32>
    %21 = vector.shape_cast %20 : vector<1x1x8x16xf32> to vector<8x16xf32>
    %22 = vector.broadcast %18 : f32 to vector<8x16xf32>
    %23 = arith.mulf %21, %22 : vector<8x16xf32>
    %24 = arith.addf %16, %23 : vector<8x16xf32>
    %c3_i32 = arith.constant 3 : i32
    %c4_i32_10 = arith.constant 4 : i32
    %25 = arith.subi %c3_i32, %c4_i32_10 : i32
    %26 = arith.sitofp %25 : i32 to f32
    %c0_11 = arith.constant 0 : index
    %27 = arith.index_cast %c3_i32 : i32 to index
    %c0_12 = arith.constant 0 : index
    %c0_13 = arith.constant 0 : index
    %28 = vector.load %arg2[%c0_11, %27, %c0_12, %c0_13] : memref<1x8x8x16xf32, #tpu.memory_space<vmem>>, vector<1x1x8x16xf32>
    %29 = vector.shape_cast %28 : vector<1x1x8x16xf32> to vector<8x16xf32>
    %30 = vector.broadcast %26 : f32 to vector<8x16xf32>
    %31 = arith.mulf %29, %30 : vector<8x16xf32>
    %32 = arith.addf %24, %31 : vector<8x16xf32>
    %c4_i32_14 = arith.constant 4 : i32
    %c4_i32_15 = arith.constant 4 : i32
    %33 = arith.subi %c4_i32_14, %c4_i32_15 : i32
    %34 = arith.sitofp %33 : i32 to f32
    %c0_16 = arith.constant 0 : index
    %35 = arith.index_cast %c4_i32_14 : i32 to index
    %c0_17 = arith.constant 0 : index
    %c0_18 = arith.constant 0 : index
    %36 = vector.load %arg2[%c0_16, %35, %c0_17, %c0_18] : memref<1x8x8x16xf32, #tpu.memory_space<vmem>>, vector<1x1x8x16xf32>
    %37 = vector.shape_cast %36 : vector<1x1x8x16xf32> to vector<8x16xf32>
    %38 = vector.broadcast %34 : f32 to vector<8x16xf32>
    %39 = arith.mulf %37, %38 : vector<8x16xf32>
    %40 = arith.addf %32, %39 : vector<8x16xf32>
    %c5_i32 = arith.constant 5 : i32
    %c4_i32_19 = arith.constant 4 : i32
    %41 = arith.subi %c5_i32, %c4_i32_19 : i32
    %42 = arith.sitofp %41 : i32 to f32
    %c0_20 = arith.constant 0 : index
    %43 = arith.index_cast %c5_i32 : i32 to index
    %c0_21 = arith.constant 0 : index
    %c0_22 = arith.constant 0 : index
    %44 = vector.load %arg2[%c0_20, %43, %c0_21, %c0_22] : memref<1x8x8x16xf32, #tpu.memory_space<vmem>>, vector<1x1x8x16xf32>
    %45 = vector.shape_cast %44 : vector<1x1x8x16xf32> to vector<8x16xf32>
    %46 = vector.broadcast %42 : f32 to vector<8x16xf32>
    %47 = arith.mulf %45, %46 : vector<8x16xf32>
    %48 = arith.addf %40, %47 : vector<8x16xf32>
    %c6_i32 = arith.constant 6 : i32
    %c4_i32_23 = arith.constant 4 : i32
    %49 = arith.subi %c6_i32, %c4_i32_23 : i32
    %50 = arith.sitofp %49 : i32 to f32
    %c0_24 = arith.constant 0 : index
    %51 = arith.index_cast %c6_i32 : i32 to index
    %c0_25 = arith.constant 0 : index
    %c0_26 = arith.constant 0 : index
    %52 = vector.load %arg2[%c0_24, %51, %c0_25, %c0_26] : memref<1x8x8x16xf32, #tpu.memory_space<vmem>>, vector<1x1x8x16xf32>
    %53 = vector.shape_cast %52 : vector<1x1x8x16xf32> to vector<8x16xf32>
    %54 = vector.broadcast %50 : f32 to vector<8x16xf32>
    %55 = arith.mulf %53, %54 : vector<8x16xf32>
    %56 = arith.addf %48, %55 : vector<8x16xf32>
    %c7_i32 = arith.constant 7 : i32
    %c4_i32_27 = arith.constant 4 : i32
    %57 = arith.subi %c7_i32, %c4_i32_27 : i32
    %58 = arith.sitofp %57 : i32 to f32
    %c0_28 = arith.constant 0 : index
    %59 = arith.index_cast %c7_i32 : i32 to index
    %c0_29 = arith.constant 0 : index
    %c0_30 = arith.constant 0 : index
    %60 = vector.load %arg2[%c0_28, %59, %c0_29, %c0_30] : memref<1x8x8x16xf32, #tpu.memory_space<vmem>>, vector<1x1x8x16xf32>
    %61 = vector.shape_cast %60 : vector<1x1x8x16xf32> to vector<8x16xf32>
    %62 = vector.broadcast %58 : f32 to vector<8x16xf32>
    %63 = arith.mulf %61, %62 : vector<8x16xf32>
    %64 = arith.addf %56, %63 : vector<8x16xf32>
    %c8_i32 = arith.constant 8 : i32
    %c0_31 = arith.constant 0 : index
    %c0_32 = arith.constant 0 : index
    %c0_33 = arith.constant 0 : index
    %c0_34 = arith.constant 0 : index
    %65 = vector.load %arg3[%c0_31, %c0_32, %c0_33, %c0_34] : memref<1x1x8x16xf32, #tpu.memory_space<vmem>>, vector<1x1x8x16xf32>
    %66 = vector.shape_cast %65 : vector<1x1x8x16xf32> to vector<8x16xf32>
    %67 = vector.shape_cast %64 : vector<8x16xf32> to vector<1x1x8x16xf32>
    tpu.vector_store %arg3[%c0_31, %c0_32, %c0_33, %c0_34], %67 {strides = array<i32>} : memref<1x1x8x16xf32, #tpu.memory_space<vmem>>, vector<1x1x8x16xf32>,
    return
  }
  func.func @transform_0(%arg0: i32, %arg1: i32) -> (i32, i32, i32, i32) {
    %c0_i32 = arith.constant 0 : i32
    %c0_i32_0 = arith.constant 0 : i32
    %c0_i32_1 = arith.constant 0 : i32
    return %arg0, %c0_i32, %arg1, %c0_i32_0 : i32, i32, i32, i32
  }
  func.func @transform_1(%arg0: i32, %arg1: i32) -> (i32, i32, i32, i32) {
    %c0_i32 = arith.constant 0 : i32
    %c0_i32_0 = arith.constant 0 : i32
    %c0_i32_1 = arith.constant 0 : i32
    return %arg0, %c0_i32, %arg1, %c0_i32_0 : i32, i32, i32, i32
  }
}

</mosaic_0001>

<llo_original>
// kernel: tpu_custom_call.1
$region0: #{tpu_custom_call.1}
  #allocation0 [shape = 'u32[]', space=smem, size = 0x4, offset = 0x4, fixed_abs, tag = 'smem constant byte address 0x4 - core index']
  #allocation1 [shape = 'u32[144,128]{1,0:T(1,128)}', space=vmem, size = 0x12000, scoped, tag = 'internal scratch']
  %s0 = inlined_call_operand.hbm [shape: f32[2,8,16,16], index: 0, kind: input, shape index: {}]
  %s1 = inlined_call_operand.hbm [shape: f32[2,1,16,16], index: 1, kind: output, shape index: {}]
  %s2 = sld [smem:[#allocation0]]
  $region41: #{tpu_custom_call.1} parent=0
    _
  %s4 = ssub.s32 1, %s2
  %s5 = scalar_select 0, %s4, %s2
  $region1: #{tpu_custom_call.1} parent=0
    #allocation2 [shape = 'u8[65536]{0}', space=vmem, size = 0x10000, scoped, tag = 'input window, operand 0']
    #allocation3 [shape = 's32[2]{0}', space=sflag, size = 0x8, scoped, tag = 'scoped memory for tpu_custom_call.1']
    #allocation4 [shape = 's32[2]{0}', space=sflag, size = 0x8, scoped, tag = 'scoped memory for tpu_custom_call.1']
    #allocation5 [shape = 'u8[8192]{0}', space=vmem, size = 0x2000, scoped, tag = 'output window, operand 0']
    %6 = vsyncpa [#allocation3], 0
    %s7 = scalar_lea.sflag [#allocation3], 1
    %8 = vsyncpa %s7, 0
    %9 = vsyncpa [#allocation4], 0
    %s10 = scalar_lea.sflag [#allocation4], 1
    %11 = vsyncpa %s10, 0
    loop: start=0, step=1, limit=6
    $region2: #{tpu_custom_call.1} parent=1 // loop_pre_header
      _
    $region3: #{tpu_custom_call.1} parent=1 // loop_header
      %s13 = sphi 0, %s17
      %p14 = scmp.ge.s32.totalorder %s13, 6
      %s20 = sphi 0, %s32
      %s21 = sphi 0, %s28
      %s22 = sphi 0, %s20
      %s23 = sphi 0, %s21
      %s24 = sphi 0, %s22
      %s25 = sphi 0, %s23
      %s37 = sphi 0, %s39
      %s40 = sphi 0, %s37
      %s41 = sphi 0, %s40
      %s57 = sphi 0, %s41
      %s65 = sphi 0, %s67
      %s68 = sphi 0, %s65
      %s69 = sphi 0, %s68
      %s85 = sphi 0, %s69
    $region4: #{tpu_custom_call.1} parent=1 // loop_header_branch
      %16 = sbr.rel (%p14) target = $region8
    $region5: #{tpu_custom_call.1} parent=1 // loop_body
      %s18 = ssub.s32 %s13, 1
      %s19 = ssub.s32 %s13, 2
      %s26 = sadd.s32 1, %s21
      %p27 = scmp.ge.s32.totalorder %s26, 2
      %s28 = scalar_select %p27, 0, %s26
      %s29 = sadd.s32 1, %s20
      %s30 = scalar_select %p27, %s29, %s20
      %p31 = scmp.ge.s32.totalorder %s30, 2
      %s32 = scalar_select %p31, 0, %s30
      %s33 = ssub.s32 %s20, %s32
      %s34 = ssub.s32 %s21, %s28
      %s35 = sor.u32 %s33, %s34
      %p36 = scmp.eq.s32.totalorder %s35, 0
      %s38 = sadd.s32 %s37, 1
      %s39 = scalar_select %p36, %s37, %s38
      %p42 = pneg %p36
      %p43 = scmp.eq.s32.totalorder %s13, 3
      %p44 = por %p42, %p43
      %p45 = scmp.ne.s32.totalorder %s37, %s40
      %p46 = scmp.eq.s32.totalorder %s13, 0
      %p47 = por %p45, %p46
      %p48 = scmp.ne.s32.totalorder %s37, %s40
      %p49 = scmp.eq.s32.totalorder %s18, 3
      %p50 = por %p48, %p49
      %p51 = scmp.ne.s32.totalorder %s40, %s41
      %p52 = scmp.eq.s32.totalorder %s18, 0
      %p53 = por %p51, %p52
      %p54 = scmp.ne.s32.totalorder %s40, %s41
      %p55 = scmp.eq.s32.totalorder %s19, 3
      %p56 = por %p54, %p55
      %p58 = scmp.ne.s32.totalorder %s41, %s57
      %p59 = scmp.eq.s32.totalorder %s19, 0
      %p60 = por %p58, %p59
      %s61 = ssub.s32 %s20, %s32
      %s62 = ssub.s32 %s21, %s28
      %s63 = sor.u32 %s61, %s62
      %p64 = scmp.eq.s32.totalorder %s63, 0
      %s66 = sadd.s32 %s65, 1
      %s67 = scalar_select %p64, %s65, %s66
      %p70 = pneg %p64
      %p71 = scmp.eq.s32.totalorder %s13, 3
      %p72 = por %p70, %p71
      %p73 = scmp.ne.s32.totalorder %s65, %s68
      %p74 = scmp.eq.s32.totalorder %s13, 0
      %p75 = por %p73, %p74
      %p76 = scmp.ne.s32.totalorder %s65, %s68
      %p77 = scmp.eq.s32.totalorder %s18, 3
      %p78 = por %p76, %p77
      %p79 = scmp.ne.s32.totalorder %s68, %s69
      %p80 = scmp.eq.s32.totalorder %s18, 0
      %p81 = por %p79, %p80
      %p82 = scmp.ne.s32.totalorder %s68, %s69
      %p83 = scmp.eq.s32.totalorder %s19, 3
      %p84 = por %p82, %p83
      %p86 = scmp.ne.s32.totalorder %s69, %s85
      %p87 = scmp.eq.s32.totalorder %s19, 0
      %p88 = por %p86, %p87
      %p89 = scmp.le.s32.totalorder 1, %s13
      %p90 = scmp.lt.s32.totalorder %s13, 5
      %p91 = pnand %p89, %p90
      %p92 = pneg %p91
      // Predicated region
      $region9: #{tpu_custom_call.1} parent=5 // pred_check
        _
      $region10: #{tpu_custom_call.1} parent=5 // pred_check_branch
        %94 = sbr.rel (%p91) target = $region12
      $region11: #{tpu_custom_call.1} parent=5 // pred_region
        %s95 = ssub.s32 %s13, 1
      $region12: #{tpu_custom_call.1} parent=5 // pred_fallthru
        _
      %p96 = scmp.lt.s32.totalorder %s13, 4
      // Predicated region
      $region13: #{tpu_custom_call.1} parent=5 // pred_check
        %p97 = pneg %p96
      $region14: #{tpu_custom_call.1} parent=5 // pred_check_branch
        %99 = sbr.rel (%p97) target = $region16
      $region15: #{tpu_custom_call.1} parent=5 // pred_region
        // Predicated region
        $region17: #{tpu_custom_call.1} parent=15 // pred_check
          %p100 = pneg %p47
        $region18: #{tpu_custom_call.1} parent=15 // pred_check_branch
          %102 = sbr.rel (%p100) target = $region20
        $region19: #{tpu_custom_call.1} parent=15 // pred_region
          %s103 = sand.u32 %s37, 1
          %s104 = scalar_lea.sflag [#allocation3], %s103
          %s105 = sand.u32 %s37, 1
          %s106 = smul.addr %s105, 64
          %s107 = scalar_lea.vmem [#allocation2], %s106
          %s109 = ssub.s32 1024, 1024
          %110 = vsyncadd %s104, %s109
          %s111 = smul.addr %s20, 16
          %s112 = sadd.s32 %s21, %s111
          %s113 = smul.addr %s112, 128
          %s114 = scalar_lea.hbm %s0, %s113
          %s115 = sshll.u32 %s107, 4
          %s116 = int_to_ptr.vmem [resolvable:$true] %s115
          %121 = dma.hbm_to_vmem [thread:$0]  %s114, 1024, %s116, %s104, 256, 128, 8
        $region20: #{tpu_custom_call.1} parent=15 // pred_fallthru
          _
      $region16: #{tpu_custom_call.1} parent=5 // pred_fallthru
        _
      %p122 = scmp.le.s32.totalorder 1, %s13
      %p123 = scmp.lt.s32.totalorder %s13, 5
      %p124 = pnand %p122, %p123
      %p125 = pneg %p124
      // Predicated region
      $region21: #{tpu_custom_call.1} parent=5 // pred_check
        _
      $region22: #{tpu_custom_call.1} parent=5 // pred_check_branch
        %127 = sbr.rel (%p124) target = $region24
      $region23: #{tpu_custom_call.1} parent=5 // pred_region
        %s128 = ssub.s32 %s13, 1
        %s129 = sand.u32 %s40, 1
        %s130 = scalar_lea.sflag [#allocation3], %s129
        %s131 = sand.u32 %s40, 1
        %s132 = smul.addr %s131, 64
        %s133 = scalar_lea.vmem [#allocation2], %s132
        // Predicated region
        $region25: #{tpu_custom_call.1} parent=23 // pred_check
          %p134 = pneg %p53
        $region26: #{tpu_custom_call.1} parent=23 // pred_check_branch
          %136 = sbr.rel (%p134) target = $region28
        $region27: #{tpu_custom_call.1} parent=23 // pred_region
          %137 = dma.done %s130, 1024
        $region28: #{tpu_custom_call.1} parent=23 // pred_fallthru
          _
        %s138 = sand.u32 %s40, 1
        %s139 = scalar_lea.sflag [#allocation3], %s138
        %s140 = sand.u32 %s40, 1
        %s141 = smul.addr %s140, 64
        %s142 = scalar_lea.vmem [#allocation2], %s141
        %p143 = pneg %p53
        %p144 = pneg %p50
        %p145 = pneg %p81
        %p146 = pneg %p78
        %s147 = sand.u32 %s68, 1
        %s148 = scalar_lea.sflag [#allocation4], %s147
        %s149 = sand.u32 %s68, 1
        %s150 = smul.addr %s149, 8
        %s151 = scalar_lea.vmem [#allocation5], %s150
        %v152 = vld [vmem:[%s133] sm:$0xff]
        %v153 = vmul.f32 %v152, -4.0
        %v154 = vadd.f32 %v153, 0.0
        %s155 = scalar_lea.vmem %s133, 8 [#allocation2]
        %v156 = vld [vmem:[%s155] sm:$0xff]
        %v157 = vmul.f32 %v156, -3.0
        %v158 = vadd.f32 %v154, %v157
        %s159 = scalar_lea.vmem %s133, 16 [#allocation2]
        %v160 = vld [vmem:[%s159] sm:$0xff]
        %v161 = vmul.f32 %v160, -2.0
        %v162 = vadd.f32 %v158, %v161
        %s163 = scalar_lea.vmem %s133, 24 [#allocation2]
        %v164 = vld [vmem:[%s163] sm:$0xff]
        %v165 = vmul.f32 %v164, -1.0
        %v166 = vadd.f32 %v162, %v165
        %s167 = scalar_lea.vmem %s133, 32 [#allocation2]
        %v168 = vld [vmem:[%s167] sm:$0xff]
        %v169 = vmul.f32 %v168, 0.0
        %v170 = vadd.f32 %v166, %v169
        %s171 = scalar_lea.vmem %s133, 40 [#allocation2]
        %v172 = vld [vmem:[%s171] sm:$0xff]
        %v173 = vadd.f32 %v170, %v172
        %s174 = scalar_lea.vmem %s133, 48 [#allocation2]
        %v175 = vld [vmem:[%s174] sm:$0xff]
        %v176 = vmul.f32 %v175, 2.0
        %v177 = vadd.f32 %v173, %v176
        %s178 = scalar_lea.vmem %s133, 56 [#allocation2]
        %v179 = vld [vmem:[%s178] sm:$0xff]
        %v180 = vmul.f32 %v179, 3.0
        %v181 = vadd.f32 %v177, %v180
        %vm182 = vcmask 130048
        %183 = vst.msk [vmem:[%s151] sm:$0xff] %vm182, %v181
        %s184 = sand.u32 %s68, 1
        %s185 = scalar_lea.sflag [#allocation4], %s184
        %s186 = sand.u32 %s68, 1
        %s187 = smul.addr %s186, 8
        %s188 = scalar_lea.vmem [#allocation5], %s187
        // Predicated region
        $region29: #{tpu_custom_call.1} parent=23 // pred_check
          %p189 = pneg %p78
        $region30: #{tpu_custom_call.1} parent=23 // pred_check_branch
          %191 = sbr.rel (%p189) target = $region32
        $region31: #{tpu_custom_call.1} parent=23 // pred_region
          %s193 = ssub.s32 128, 128
          %194 = vsyncadd %s185, %s193
          %s195 = smul.addr %s22, 2
          %s196 = sadd.s32 %s23, %s195
          %s197 = smul.addr %s196, 128
          %s198 = scalar_lea.hbm %s1, %s197
          %s200 = sshll.u32 %s188, 4
          %s201 = int_to_ptr.vmem [resolvable:$true] %s200
          %203 = dma.vmem_to_hbm [thread:$0]  %s201, 128, %s198, %s185
        $region32: #{tpu_custom_call.1} parent=23 // pred_fallthru
          _
      $region24: #{tpu_custom_call.1} parent=5 // pred_fallthru
        _
      %p204 = scmp.le.s32.totalorder 2, %s13
      // Predicated region
      $region33: #{tpu_custom_call.1} parent=5 // pred_check
        %p205 = pneg %p204
      $region34: #{tpu_custom_call.1} parent=5 // pred_check_branch
        %207 = sbr.rel (%p205) target = $region36
      $region35: #{tpu_custom_call.1} parent=5 // pred_region
        %s208 = ssub.s32 %s13, 2
        // Predicated region
        $region37: #{tpu_custom_call.1} parent=35 // pred_check
          %p209 = pneg %p84
        $region38: #{tpu_custom_call.1} parent=35 // pred_check_branch
          %211 = sbr.rel (%p209) target = $region40
        $region39: #{tpu_custom_call.1} parent=35 // pred_region
          %s212 = sand.u32 %s69, 1
          %s213 = scalar_lea.sflag [#allocation4], %s212
          %s214 = sand.u32 %s69, 1
          %s215 = smul.addr %s214, 8
          %s216 = scalar_lea.vmem [#allocation5], %s215
          %217 = dma.done %s213, 128
        $region40: #{tpu_custom_call.1} parent=35 // pred_fallthru
          _
      $region36: #{tpu_custom_call.1} parent=5 // pred_fallthru
        _
    $region6: #{tpu_custom_call.1} parent=1 // loop_footer
      %s17 = sadd.s32 1, %s13
    $region7: #{tpu_custom_call.1} parent=1 // loop_footer_branch
      %12 = sbr.rel target = $region3
    $region8: #{tpu_custom_call.1} parent=1 // loop_exit
      _
    %218 = vsyncpa [#allocation3], 1
    %s219 = scalar_lea.sflag [#allocation3], 1
    %220 = vsyncpa %s219, 1
    %221 = vsyncpa [#allocation4], 1
    %s222 = scalar_lea.sflag [#allocation4], 1
    %223 = vsyncpa %s222, 1

</llo_original>
